<compile_context>
chip_gen: v5e
topology: v5e:2x2
jax: 0.10.0
libtpu: 0.0.40
codegen_flags: <defaults>
</compile_context>

<pallas_src>
import math
import functools

import jax
import jax.numpy as jnp
from jax.experimental import pallas as pl
from jax.experimental.pallas import tpu as pltpu


def _round_up(x, m):
    return ((x + m - 1) // m) * m


def _cdiv(a, b):
    return (a + b - 1) // b


def _encoder_layer_kernel(x_ref, w_ref, ss_ref, out_ref, *, kernel_size, stride,
                          left, activation, include_batch_norm, do_residual,
                          mxu_dtype):
    # x_ref:   (stride, C_in, tile_t + halo)  phase-decomposed padded input (f32)
    # w_ref:   (C_out, K*C_in)                conv weight, rows ordered [k, c_in]
    # ss_ref:  (C_out, 2)                     f32 per-channel [scale, shift]
    # out_ref: (C_out, tile_t)                f32, lane-dense (tile_t % 128 == 0)
    tm = out_ref.shape[-1]

    # In-kernel tap gather: tap k of output t reads x_pad[t*stride + k], which is
    # phase[k % stride][t + k // stride] -> every slice is unstrided with a
    # *static* start (the tile offset is handled by the BlockSpec slab).
    taps = [x_ref[k % stride, :, (k // stride):(k // stride) + tm]
            for k in range(kernel_size)]                       # K x (C_in, tm)
    patch = jnp.concatenate([t.astype(mxu_dtype) for t in taps], axis=0)

    # One fused (C_out, K*C_in) x (K*C_in, tile_t) MXU matmul, f32 accumulation.
    acc = jnp.dot(w_ref[...], patch, preferred_element_type=jnp.float32)

    if do_residual:
        # stride == 1 guaranteed here; centre tap == unpadded x, added in f32.
        acc = acc + taps[left].astype(jnp.float32)

    # Epilogue stays f32 (v5e VPU/EUP have no bf16 path).
    if include_batch_norm:
        acc = acc * ss_ref[:, 0:1] + ss_ref[:, 1:2]
    else:
        acc = acc + ss_ref[:, 1:2]
    if activation == "tanh":
        acc = jnp.tanh(acc)
    else:
        acc = jnp.maximum(acc, 0.0)
    out_ref[...] = acc.astype(out_ref.dtype)


def encoder_layer_forward(xs_pad, weight, bias, bn_scale=None, bn_shift=None, *,
                          kernel_size=3, stride=1, activation="tanh",
                          residual=False, include_batch_norm=False,
                          tile_time=2048, mxu_dtype=jnp.bfloat16):
    """xs_pad: (B, C_in, T) float32, PyTorch NCW.  Returns (B, C_out, T_out)."""
    B, C_in, T = xs_pad.shape
    C_out = weight.shape[0]
    K = int(kernel_size)
    s = int(stride)

    left = math.ceil((K - s) / 2)
    right = K - s - left
    if left < 0 or right < 0:
        # ConstantPad1d with negative padding would silently crop.
        raise ValueError("stride > kernel_size is not supported (negative pad).")
    T_pad = T + left + right
    T_out = (T_pad - K) // s + 1
    do_residual = bool(residual and s == 1 and C_in == C_out)

    # Output-time tile: multiple of 128 (lane-dense stores), big enough to
    # amortize per-step cost; keep >= 2 grid steps when batch can't provide them.
    tm = min(_round_up(int(tile_time), 128), _round_up(T_out, 128))
    if B == 1:
        tm = min(tm, max(128, _round_up(_cdiv(T_out, 2), 128)))
    n_t = _cdiv(T_out, tm)
    T_out_al = n_t * tm

    # Phase-decomposed, zero-padded input cut into per-tile slabs:
    #   phases[b, p, c, u] = x_pad[b, c, u*s + p]
    # so the in-kernel tap slices are unstrided and static.  Slabs carry a
    # (K-1)//s halo; duplication is negligible (~halo/tm of input volume).
    halo = (K - 1) // s
    U = T_out_al + halo
    total = U * s
    pad_r = max(0, total - T - left)
    x_p = jnp.pad(xs_pad, ((0, 0), (0, 0), (left, pad_r)))[:, :, :total]
    x_ph = jnp.transpose(x_p.reshape(B, C_in, U, s), (0, 3, 1, 2))   # (B,s,C_in,U)
    x_slabs = jnp.stack(
        [x_ph[..., j * tm:j * tm + tm + halo] for j in range(n_t)],
        axis=1).reshape(B * n_t, s, C_in, tm + halo)

    # Fold conv weight to (C_out, K*C_in) with rows ordered [k, c_in] to match the
    # in-kernel tap concatenation; fold conv bias + eval-mode BN into scale/shift.
    w2d = jnp.transpose(weight, (0, 2, 1)).reshape(C_out, K * C_in).astype(mxu_dtype)
    if include_batch_norm:
        # TODO(synk): eval-mode BatchNorm only; bn_scale/bn_shift must be the
        # pre-folded gamma/sqrt(var+eps) and beta - mean*gamma/sqrt(var+eps).
        scale = bn_scale.astype(jnp.float32)
        shift = bias.astype(jnp.float32) * scale + bn_shift.astype(jnp.float32)
    else:
        scale = jnp.ones((C_out,), jnp.float32)
        shift = bias.astype(jnp.float32)
    ss = jnp.stack([scale, shift], axis=1)                            # (C_out, 2)

    kernel = functools.partial(
        _encoder_layer_kernel, kernel_size=K, stride=s, left=left,
        activation=activation, include_batch_norm=bool(include_batch_norm),
        do_residual=do_residual, mxu_dtype=mxu_dtype)

    out = pl.pallas_call(
        kernel,
        out_shape=jax.ShapeDtypeStruct((B, C_out, T_out_al), jnp.float32),
        grid=(B, n_t),
        in_specs=[
            pl.BlockSpec((None, s, C_in, tm + halo),
                         lambda b, j: (b * n_t + j, 0, 0, 0)),
            pl.BlockSpec((C_out, K * C_in), lambda b, j: (0, 0)),
            pl.BlockSpec((C_out, 2), lambda b, j: (0, 0)),
        ],
        out_specs=pl.BlockSpec((None, C_out, tm), lambda b, j: (b, 0, j)),
        compiler_params=pltpu.CompilerParams(
            dimension_semantics=("parallel", "parallel"),
            vmem_limit_bytes=32 * 1024 * 1024),
    )(x_slabs, w2d, ss)

    if T_out_al != T_out:
        out = out[:, :, :T_out]
    return out.astype(xs_pad.dtype)


def encoder_layer_reference(xs_pad, weight, bias, bn_scale, bn_shift, *,
                            kernel_size=3, stride=1, activation="tanh",
                            residual=False, include_batch_norm=False):
    """Pure-JAX f32 reference mirroring the PyTorch forward."""
    B, C_in, T = xs_pad.shape
    left = math.ceil((kernel_size - stride) / 2)
    right = kernel_size - stride - left
    xp = jnp.pad(xs_pad, ((0, 0), (0, 0), (left, right)))
    t_out = (xp.shape[2] - kernel_size) // stride + 1
    frames = jnp.stack(
        [xp[:, :, k:k + stride * (t_out - 1) + 1:stride]
         for k in range(kernel_size)], axis=-1)               # (B, C_in, T_out, K)
    out = jnp.einsum("bctk,ock->bot", frames, weight,
                     precision=jax.lax.Precision.HIGHEST) + bias[None, :, None]
    if residual and stride == 1 and C_in == weight.shape[0]:
        out = out + xs_pad
    if include_batch_norm:
        out = out * bn_scale[None, :, None] + bn_shift[None, :, None]
    return jnp.tanh(out) if activation == "tanh" else jnp.maximum(out, 0.0)


if __name__ == "__main__":
    # EncoderLayer(input_units=32, num_units=32, kernel_size=3, ...)
    B, C_IN, C_OUT, T, K = 2, 32, 32, 16, 3

    key = jax.random.PRNGKey(0)
    kx, kw, kb, kg, kbt = jax.random.split(key, 5)

    xs_pad = jax.random.normal(kx, (B, C_IN, T), dtype=jnp.float32)
    fan_in = C_IN * K
    bound = 1.0 / math.sqrt(fan_in)
    weight = jax.random.uniform(kw, (C_OUT, C_IN, K), jnp.float32, -bound, bound)
    bias = jax.random.uniform(kb, (C_OUT,), jnp.float32, -bound, bound)
    # Eval-mode BN pre-folded to per-channel scale/shift.
    bn_scale = jax.random.uniform(kg, (C_OUT,), jnp.float32, 0.5, 1.5)
    bn_shift = jax.random.uniform(kbt, (C_OUT,), jnp.float32, -0.2, 0.2)

    configs = [
        dict(stride=1, activation="tanh", residual=True, include_batch_norm=False),
        dict(stride=2, activation="relu", residual=True, include_batch_norm=True),
    ]
    for cfg in configs:
        ref = encoder_layer_reference(
            xs_pad, weight, bias, bn_scale, bn_shift, kernel_size=K, **cfg)
        out = encoder_layer_forward(
            xs_pad, weight, bias, bn_scale, bn_shift, kernel_size=K, **cfg)
        out = jax.block_until_ready(out)
        assert out.shape == ref.shape, (out.shape, ref.shape)
        err = float(jnp.max(jnp.abs(out - ref)))
        # bf16 MXU operands with f32 accumulation / f32 residual+epilogue.
        assert jnp.allclose(out, ref, rtol=2e-2, atol=2e-2), (cfg, err)

    print("KERNEL_OK")
</pallas_src>

<mosaic_0001>
module attributes {stable_mosaic.version = 11 : i64} {
  func.func @_encoder_layer_kernel(%arg0: i32, %arg1: i32, %arg2: memref<1x1x32x130xf32, #tpu.memory_space<vmem>>, %arg3: memref<32x96xbf16, #tpu.memory_space<vmem>>, %arg4: memref<32x2xf32, #tpu.memory_space<vmem>>, %arg5: memref<1x32x128xf32, #tpu.memory_space<vmem>>) attributes {dimension_semantics = [#tpu.dimension_semantics<parallel>, #tpu.dimension_semantics<parallel>], iteration_bounds = array<i64: 2, 1>, scalar_prefetch = 0 : i64, scratch_operands = 0 : i64, tpu.core_type = #tpu.core_type<tc>, window_params = [{transform_indices = @transform_0, window_bounds = array<i64: 1, 1, 32, 130>}, {pipeline_mode = #tpu.pipeline_mode<synchronous>, transform_indices = @transform_1, window_bounds = array<i64: 32, 96>}, {pipeline_mode = #tpu.pipeline_mode<synchronous>, transform_indices = @transform_2, window_bounds = array<i64: 32, 2>}, {transform_indices = @transform_3, window_bounds = array<i64: 1, 32, 128>}]} {
    %c0 = arith.constant 0 : index
    %c0_0 = arith.constant 0 : index
    %c0_1 = arith.constant 0 : index
    %c0_2 = arith.constant 0 : index
    %0 = vector.load %arg2[%c0, %c0_0, %c0_1, %c0_2] : memref<1x1x32x130xf32, #tpu.memory_space<vmem>>, vector<1x1x32x128xf32>
    %1 = vector.shape_cast %0 : vector<1x1x32x128xf32> to vector<32x128xf32>
    %c0_3 = arith.constant 0 : index
    %c0_4 = arith.constant 0 : index
    %c0_5 = arith.constant 0 : index
    %c1 = arith.constant 1 : index
    %2 = vector.load %arg2[%c0_3, %c0_4, %c0_5, %c1] : memref<1x1x32x130xf32, #tpu.memory_space<vmem>>, vector<1x1x32x128xf32>
    %3 = vector.shape_cast %2 : vector<1x1x32x128xf32> to vector<32x128xf32>
    %c0_6 = arith.constant 0 : index
    %c0_7 = arith.constant 0 : index
    %c0_8 = arith.constant 0 : index
    %c2 = arith.constant 2 : index
    %4 = vector.load %arg2[%c0_6, %c0_7, %c0_8, %c2] : memref<1x1x32x130xf32, #tpu.memory_space<vmem>>, vector<1x1x32x128xf32>
    %5 = vector.shape_cast %4 : vector<1x1x32x128xf32> to vector<32x128xf32>
    %6 = arith.truncf %1 : vector<32x128xf32> to vector<32x128xbf16>
    %7 = arith.truncf %3 : vector<32x128xf32> to vector<32x128xbf16>
    %8 = arith.truncf %5 : vector<32x128xf32> to vector<32x128xbf16>
    %9 = tpu.concatenate %6, %7, %8 in 0 : vector<32x128xbf16>, vector<32x128xbf16>, vector<32x128xbf16> -> vector<96x128xbf16>
    %c0_9 = arith.constant 0 : index
    %c0_10 = arith.constant 0 : index
    %10 = vector.load %arg3[%c0_9, %c0_10] : memref<32x96xbf16, #tpu.memory_space<vmem>>, vector<32x96xbf16>
    %cst = arith.constant dense<0.000000e+00> : vector<32x128xf32>
    %11 = tpu.matmul %10, %9, %cst {dimension_numbers = #tpu.dot_dimension_numbers<[1], [0], [0], [1], [0, 0, 1, 1], [], []>} : vector<32x96xbf16>, vector<96x128xbf16>, vector<32x128xf32> -> vector<32x128xf32>
    %12 = arith.addf %11, %3 : vector<32x128xf32>
    %c0_11 = arith.constant 0 : index
    %c1_12 = arith.constant 1 : index
    %13 = vector.load %arg4[%c0_11, %c1_12] : memref<32x2xf32, #tpu.memory_space<vmem>>, vector<32x1xf32>
    %14 = vector.broadcast %13 : vector<32x1xf32> to vector<32x128xf32>
    %15 = arith.addf %12, %14 : vector<32x128xf32>
    %16 = math.tanh %15 : vector<32x128xf32>
    %c0_13 = arith.constant 0 : index
    %c0_14 = arith.constant 0 : index
    %c0_15 = arith.constant 0 : index
    %17 = vector.load %arg5[%c0_13, %c0_14, %c0_15] : memref<1x32x128xf32, #tpu.memory_space<vmem>>, vector<1x32x128xf32>
    %18 = vector.shape_cast %17 : vector<1x32x128xf32> to vector<32x128xf32>
    %19 = vector.shape_cast %16 : vector<32x128xf32> to vector<1x32x128xf32>
    tpu.vector_store %arg5[%c0_13, %c0_14, %c0_15], %19 {strides = array<i32>} : memref<1x32x128xf32, #tpu.memory_space<vmem>>, vector<1x32x128xf32>,
    return
  }
  func.func @transform_0(%arg0: i32, %arg1: i32) -> (i32, i32, i32, i32) {
    %c1_i32 = arith.constant 1 : i32
    %0 = arith.muli %arg0, %c1_i32 : i32
    %1 = arith.addi %0, %arg1 : i32
    %c0_i32 = arith.constant 0 : i32
    %c0_i32_0 = arith.constant 0 : i32
    %c0_i32_1 = arith.constant 0 : i32
    %c0_i32_2 = arith.constant 0 : i32
    return %1, %c0_i32, %c0_i32_0, %c0_i32_1 : i32, i32, i32, i32
  }
  func.func @transform_1(%arg0: i32, %arg1: i32) -> (i32, i32) {
    %c0_i32 = arith.constant 0 : i32
    %c0_i32_0 = arith.constant 0 : i32
    %c0_i32_1 = arith.constant 0 : i32
    return %c0_i32, %c0_i32_0 : i32, i32
  }
  func.func @transform_2(%arg0: i32, %arg1: i32) -> (i32, i32) {
    %c0_i32 = arith.constant 0 : i32
    %c0_i32_0 = arith.constant 0 : i32
    %c0_i32_1 = arith.constant 0 : i32
    return %c0_i32, %c0_i32_0 : i32, i32
  }
  func.func @transform_3(%arg0: i32, %arg1: i32) -> (i32, i32, i32) {
    %c0_i32 = arith.constant 0 : i32
    %c0_i32_0 = arith.constant 0 : i32
    return %arg0, %c0_i32, %arg1 : i32, i32, i32
  }
}

</mosaic_0001>

<llo_original>
// kernel: tpu_custom_call.1
$region0: #{tpu_custom_call.1}
  #allocation0 [shape = 'u32[]', space=smem, size = 0x4, offset = 0x4, fixed_abs, tag = 'smem constant byte address 0x4 - core index']
  #allocation1 [shape = 'u32[72,128]{1,0:T(1,128)}', space=vmem, size = 0x9000, scoped, tag = 'internal scratch']
  %s0 = inlined_call_operand.hbm [shape: f32[2,1,32,130], index: 0, kind: input, shape index: {}]
  %s1 = inlined_call_operand.vmem [shape: bf16[32,96], index: 1, kind: input, shape index: {}]
  %s2 = inlined_call_operand.vmem [shape: f32[32,2], index: 2, kind: input, shape index: {}]
  %s3 = inlined_call_operand.hbm [shape: f32[2,32,128], index: 3, kind: output, shape index: {}]
  %s4 = sld [smem:[#allocation0]]
  $region49: #{tpu_custom_call.1} parent=0
    _
  %s6 = ssub.s32 1, %s4
  %s7 = scalar_select 0, %s6, %s4
  $region1: #{tpu_custom_call.1} parent=0
    #allocation2 [shape = 'u8[65536]{0}', space=vmem, size = 0x10000, scoped, tag = 'input window, operand 0']
    #allocation3 [shape = 's32[2]{0}', space=sflag, size = 0x8, scoped, tag = 'scoped memory for tpu_custom_call.1']
    #allocation4 [shape = 's32[2]{0}', space=sflag, size = 0x8, scoped, tag = 'scoped memory for tpu_custom_call.1']
    #allocation5 [shape = 'u8[32768]{0}', space=vmem, size = 0x8000, scoped, tag = 'output window, operand 0']
    %8 = vsyncpa [#allocation3], 0
    %s9 = scalar_lea.sflag [#allocation3], 1
    %10 = vsyncpa %s9, 0
    %11 = vsyncpa [#allocation4], 0
    %s12 = scalar_lea.sflag [#allocation4], 1
    %13 = vsyncpa %s12, 0
    loop: start=0, step=1, limit=4
    $region2: #{tpu_custom_call.1} parent=1 // loop_pre_header
      _
    $region3: #{tpu_custom_call.1} parent=1 // loop_header
      %s15 = sphi 0, %s19
      %p16 = scmp.ge.s32.totalorder %s15, 4
      %s22 = sphi 0, %s34
      %s23 = sphi 0, %s30
      %s24 = sphi 0, %s22
      %s25 = sphi 0, %s23
      %s26 = sphi 0, %s24
      %s27 = sphi 0, %s25
      %s39 = sphi 0, %s41
      %s42 = sphi 0, %s39
      %s43 = sphi 0, %s42
      %s59 = sphi 0, %s43
      %s63 = sphi 0, %s63
      %s65 = sphi 0, %s63
      %s66 = sphi 0, %s65
      %s80 = sphi 0, %s66
      %s84 = sphi 0, %s84
      %s86 = sphi 0, %s84
      %s87 = sphi 0, %s86
      %s101 = sphi 0, %s87
      %s109 = sphi 0, %s111
      %s112 = sphi 0, %s109
      %s113 = sphi 0, %s112
      %s129 = sphi 0, %s113
    $region4: #{tpu_custom_call.1} parent=1 // loop_header_branch
      %18 = sbr.rel (%p16) target = $region8
    $region5: #{tpu_custom_call.1} parent=1 // loop_body
      %s20 = ssub.s32 %s15, 1
      %s21 = ssub.s32 %s15, 2
      %s28 = sadd.s32 1, %s23
      %p29 = scmp.ge.s32.totalorder %s28, 1
      %s30 = scalar_select %p29, 0, %s28
      %s31 = sadd.s32 1, %s22
      %s32 = scalar_select %p29, %s31, %s22
      %p33 = scmp.ge.s32.totalorder %s32, 2
      %s34 = scalar_select %p33, 0, %s32
      %s35 = sadd.s32 %s22, %s23
      %s36 = sadd.s32 %s34, %s30
      %s37 = ssub.s32 %s35, %s36
      %p38 = scmp.eq.s32.totalorder %s37, 0
      %s40 = sadd.s32 %s39, 1
      %s41 = scalar_select %p38, %s39, %s40
      %p44 = pneg %p38
      %p45 = scmp.eq.s32.totalorder %s15, 1
      %p46 = por %p44, %p45
      %p47 = scmp.ne.s32.totalorder %s39, %s42
      %p48 = scmp.eq.s32.totalorder %s15, 0
      %p49 = por %p47, %p48
      %p50 = scmp.ne.s32.totalorder %s39, %s42
      %p51 = scmp.eq.s32.totalorder %s20, 1
      %p52 = por %p50, %p51
      %p53 = scmp.ne.s32.totalorder %s42, %s43
      %p54 = scmp.eq.s32.totalorder %s20, 0
      %p55 = por %p53, %p54
      %p56 = scmp.ne.s32.totalorder %s42, %s43
      %p57 = scmp.eq.s32.totalorder %s21, 1
      %p58 = por %p56, %p57
      %p60 = scmp.ne.s32.totalorder %s43, %s59
      %p61 = scmp.eq.s32.totalorder %s21, 0
      %p62 = por %p60, %p61
      %s64 = sadd.s32 %s63, 1
      %p67 = scmp.eq.s32.totalorder %s15, 1
      %p68 = scmp.ne.s32.totalorder %s63, %s65
      %p69 = scmp.eq.s32.totalorder %s15, 0
      %p70 = por %p68, %p69
      %p71 = scmp.ne.s32.totalorder %s63, %s65
      %p72 = scmp.eq.s32.totalorder %s20, 1
      %p73 = por %p71, %p72
      %p74 = scmp.ne.s32.totalorder %s65, %s66
      %p75 = scmp.eq.s32.totalorder %s20, 0
      %p76 = por %p74, %p75
      %p77 = scmp.ne.s32.totalorder %s65, %s66
      %p78 = scmp.eq.s32.totalorder %s21, 1
      %p79 = por %p77, %p78
      %p81 = scmp.ne.s32.totalorder %s66, %s80
      %p82 = scmp.eq.s32.totalorder %s21, 0
      %p83 = por %p81, %p82
      %s85 = sadd.s32 %s84, 1
      %p88 = scmp.eq.s32.totalorder %s15, 1
      %p89 = scmp.ne.s32.totalorder %s84, %s86
      %p90 = scmp.eq.s32.totalorder %s15, 0
      %p91 = por %p89, %p90
      %p92 = scmp.ne.s32.totalorder %s84, %s86
      %p93 = scmp.eq.s32.totalorder %s20, 1
      %p94 = por %p92, %p93
      %p95 = scmp.ne.s32.totalorder %s86, %s87
      %p96 = scmp.eq.s32.totalorder %s20, 0
      %p97 = por %p95, %p96
      %p98 = scmp.ne.s32.totalorder %s86, %s87
      %p99 = scmp.eq.s32.totalorder %s21, 1
      %p100 = por %p98, %p99
      %p102 = scmp.ne.s32.totalorder %s87, %s101
      %p103 = scmp.eq.s32.totalorder %s21, 0
      %p104 = por %p102, %p103
      %s105 = ssub.s32 %s22, %s34
      %s106 = ssub.s32 %s23, %s30
      %s107 = sor.u32 %s105, %s106
      %p108 = scmp.eq.s32.totalorder %s107, 0
      %s110 = sadd.s32 %s109, 1
      %s111 = scalar_select %p108, %s109, %s110
      %p114 = pneg %p108
      %p115 = scmp.eq.s32.totalorder %s15, 1
      %p116 = por %p114, %p115
      %p117 = scmp.ne.s32.totalorder %s109, %s112
      %p118 = scmp.eq.s32.totalorder %s15, 0
      %p119 = por %p117, %p118
      %p120 = scmp.ne.s32.totalorder %s109, %s112
      %p121 = scmp.eq.s32.totalorder %s20, 1
      %p122 = por %p120, %p121
      %p123 = scmp.ne.s32.totalorder %s112, %s113
      %p124 = scmp.eq.s32.totalorder %s20, 0
      %p125 = por %p123, %p124
      %p126 = scmp.ne.s32.totalorder %s112, %s113
      %p127 = scmp.eq.s32.totalorder %s21, 1
      %p128 = por %p126, %p127
      %p130 = scmp.ne.s32.totalorder %s113, %s129
      %p131 = scmp.eq.s32.totalorder %s21, 0
      %p132 = por %p130, %p131
      %p133 = scmp.le.s32.totalorder 1, %s15
      %p134 = scmp.lt.s32.totalorder %s15, 3
      %p135 = pnand %p133, %p134
      %p136 = pneg %p135
      // Predicated region
      $region9: #{tpu_custom_call.1} parent=5 // pred_check
        _
      $region10: #{tpu_custom_call.1} parent=5 // pred_check_branch
        %138 = sbr.rel (%p135) target = $region12
      $region11: #{tpu_custom_call.1} parent=5 // pred_region
        %s139 = ssub.s32 %s15, 1
        // Predicated region
        $region13: #{tpu_custom_call.1} parent=11 // pred_check
          %p140 = pneg %p76
        $region14: #{tpu_custom_call.1} parent=11 // pred_check_branch
          %142 = sbr.rel (%p140) target = $region16
        $region15: #{tpu_custom_call.1} parent=11 // pred_region
          _
        $region16: #{tpu_custom_call.1} parent=11 // pred_fallthru
          _
        // Predicated region
        $region17: #{tpu_custom_call.1} parent=11 // pred_check
          %p143 = pneg %p97
        $region18: #{tpu_custom_call.1} parent=11 // pred_check_branch
          %145 = sbr.rel (%p143) target = $region20
        $region19: #{tpu_custom_call.1} parent=11 // pred_region
          _
        $region20: #{tpu_custom_call.1} parent=11 // pred_fallthru
          _
      $region12: #{tpu_custom_call.1} parent=5 // pred_fallthru
        _
      %p146 = scmp.lt.s32.totalorder %s15, 2
      // Predicated region
      $region21: #{tpu_custom_call.1} parent=5 // pred_check
        %p147 = pneg %p146
      $region22: #{tpu_custom_call.1} parent=5 // pred_check_branch
        %149 = sbr.rel (%p147) target = $region24
      $region23: #{tpu_custom_call.1} parent=5 // pred_region
        // Predicated region
        $region25: #{tpu_custom_call.1} parent=23 // pred_check
          %p150 = pneg %p49
        $region26: #{tpu_custom_call.1} parent=23 // pred_check_branch
          %152 = sbr.rel (%p150) target = $region28
        $region27: #{tpu_custom_call.1} parent=23 // pred_region
          %s153 = sand.u32 %s39, 1
          %s154 = scalar_lea.sflag [#allocation3], %s153
          %s155 = sand.u32 %s39, 1
          %s156 = smul.addr %s155, 64
          %s157 = scalar_lea.vmem [#allocation2], %s156
          %s158 = sadd.s32 %s22, %s23
          %160 = vsyncadd %s154, 0
          %s161 = smul.addr %s158, 8
          %s162 = smul.addr %s161, 8
          %s163 = scalar_lea.hbm %s0, %s162
          %s164 = sshll.u32 %s163, 4
          %s165 = int_to_ptr.hbm [resolvable:$true] %s164
          %s166 = sshll.u32 %s157, 4
          %s167 = int_to_ptr.vmem [resolvable:$true] %s166
          %172 = dma.hbm_to_vmem [thread:$0]  %s165, 1024, %s167, %s154, 256, 256, 16
        $region28: #{tpu_custom_call.1} parent=23 // pred_fallthru
          _
      $region24: #{tpu_custom_call.1} parent=5 // pred_fallthru
        _
      %p173 = scmp.le.s32.totalorder 1, %s15
      %p174 = scmp.lt.s32.totalorder %s15, 3
      %p175 = pnand %p173, %p174
      %p176 = pneg %p175
      // Predicated region
      $region29: #{tpu_custom_call.1} parent=5 // pred_check
        _
      $region30: #{tpu_custom_call.1} parent=5 // pred_check_branch
        %178 = sbr.rel (%p175) target = $region32
      $region31: #{tpu_custom_call.1} parent=5 // pred_region
        %s179 = ssub.s32 %s15, 1
        %s180 = sand.u32 %s42, 1
        %s181 = scalar_lea.sflag [#allocation3], %s180
        %s182 = sand.u32 %s42, 1
        %s183 = smul.addr %s182, 64
        %s184 = scalar_lea.vmem [#allocation2], %s183
        // Predicated region
        $region33: #{tpu_custom_call.1} parent=31 // pred_check
          %p185 = pneg %p55
        $region34: #{tpu_custom_call.1} parent=31 // pred_check_branch
          %187 = sbr.rel (%p185) target = $region36
        $region35: #{tpu_custom_call.1} parent=31 // pred_region
          %189 = dma.done %s181, 1024
        $region36: #{tpu_custom_call.1} parent=31 // pred_fallthru
          _
        %s190 = sand.u32 %s42, 1
        %s191 = scalar_lea.sflag [#allocation3], %s190
        %s192 = sand.u32 %s42, 1
        %s193 = smul.addr %s192, 64
        %s194 = scalar_lea.vmem [#allocation2], %s193
        %p195 = pneg %p55
        %p196 = pneg %p52
        %p197 = pneg %p76
        %p198 = pneg %p73
        %p199 = pneg %p97
        %p200 = pneg %p94
        %p201 = pneg %p125
        %p202 = pneg %p122
        %s203 = sand.u32 %s112, 1
        %s204 = scalar_lea.sflag [#allocation4], %s203
        %s205 = sand.u32 %s112, 1
        %s206 = smul.addr %s205, 32
        %s207 = scalar_lea.vmem [#allocation5], %s206
        %s208 = sadd.s32 %s24, %s25
        %v210 = vld [vmem:[%s184] sm:$0xff]
        %v211 = vld [vmem:[%s184 + $0x10] sm:$0xff]
        %v212 = vld [vmem:[%s184 + $0x20] sm:$0xff]
        %v213 = vld [vmem:[%s184 + $0x30] sm:$0xff]
        %v214 = vld [vmem:[%s184 + $0x8] sm:$0xff]
        %v215 = vld [vmem:[%s184 + $0x18] sm:$0xff]
        %v216 = vld [vmem:[%s184 + $0x28] sm:$0xff]
        %v217 = vld [vmem:[%s184 + $0x38] sm:$0xff]
        %v218 = vpack.c.bf16 %v210, %v210
        %v219 = vpack.c.bf16 %v211, %v211
        %v220 = vpack.c.bf16 %v212, %v212
        %v221 = vpack.c.bf16 %v213, %v213
        %v222 = vpack.c.bf16 %v214, %v210
        %v223 = vpack.c.bf16 %v215, %v211
        %v224 = vpack.c.bf16 %v216, %v212
        %v225 = vpack.c.bf16 %v217, %v213
        %v230 = vunpack.c.l.b16 %v218
        %v231 = vunpack.c.l.b16 %v219
        %v232 = vunpack.c.l.b16 %v220
        %v233 = vunpack.c.l.b16 %v221
        %v234 = vpack.c.b16 %v231, %v230
        %v235 = vpack.c.b16 %v233, %v232
        %v242 = vunpack.c.l.b16 %v222
        %v243 = vunpack.c.h.b16 %v222
        %v244 = vunpack.c.l.b16 %v223
        %v245 = vunpack.c.h.b16 %v223
        %v246 = vunpack.c.l.b16 %v224
        %v247 = vunpack.c.h.b16 %v224
        %v248 = vunpack.c.l.b16 %v225
        %v249 = vunpack.c.h.b16 %v225
        %v250 = vpack.c.b16 %v244, %v242
        %v251 = vpack.c.b16 %v245, %v243
        %v252 = vpack.c.b16 %v248, %v246
        %v253 = vpack.c.b16 %v249, %v247
        %254 = vrot.lane.b32.xlu0 %v250, 127
        %v255 = vpop.permute.xlu0 %254
        %256 = vrot.lane.b32.xlu0 %v251, 127
        %v257 = vpop.permute.xlu0 %256
        %258 = vrot.lane.b32.xlu0 %v252, 127
        %v259 = vpop.permute.xlu0 %258
        %260 = vrot.lane.b32.xlu0 %v253, 127
        %v261 = vpop.permute.xlu0 %260
        %vm262 = vcmask 1039360
        %v263 = vsel %vm262, %v255, %v257
        %v264 = vsel %vm262, %v259, %v261
        %267 = vrot.lane.b32.xlu0 %v250, 126
        %v268 = vpop.permute.xlu0 %267
        %269 = vrot.lane.b32.xlu0 %v251, 126
        %v270 = vpop.permute.xlu0 %269
        %271 = vrot.lane.b32.xlu0 %v252, 126
        %v272 = vpop.permute.xlu0 %271
        %273 = vrot.lane.b32.xlu0 %v253, 126
        %v274 = vpop.permute.xlu0 %273
        %vm275 = vcmask 1031168
        %v276 = vsel %vm275, %v268, %v270
        %v277 = vsel %vm275, %v272, %v274
        %v280 = vld [vmem:[%s1] sm:$0xf]
        %v281 = vld [vmem:[%s1 + $0x4] sm:$0xf]
        %v282 = vld [vmem:[%s1 + $0x8] sm:$0xf]
        %v283 = vld [vmem:[%s1 + $0xc] sm:$0xf]
        %v288 = vunpack.c.l.b16 %v280
        %v289 = vunpack.c.l.b16 %v281
        %v290 = vunpack.c.l.b16 %v282
        %v291 = vunpack.c.l.b16 %v283
        %v292 = vpack.c.b16 %v289, %v288
        %v293 = vpack.c.b16 %v291, %v290
        %302 = vrot.lane.b32.xlu0 %v210, 127
        %v303 = vpop.permute.xlu0 %302
        %304 = vrot.lane.b32.xlu0 %v214, 127
        %v305 = vpop.permute.xlu0 %304
        %306 = vrot.lane.b32.xlu0 %v211, 127
        %v307 = vpop.permute.xlu0 %306
        %308 = vrot.lane.b32.xlu0 %v215, 127
        %v309 = vpop.permute.xlu0 %308
        %310 = vrot.lane.b32.xlu0 %v212, 127
        %v311 = vpop.permute.xlu0 %310
        %312 = vrot.lane.b32.xlu0 %v216, 127
        %v313 = vpop.permute.xlu0 %312
        %314 = vrot.lane.b32.xlu0 %v213, 127
        %v315 = vpop.permute.xlu0 %314
        %316 = vrot.lane.b32.xlu0 %v217, 127
        %v317 = vpop.permute.xlu0 %316
        %vm318 = vcmask 1039360
        %v319 = vsel %vm318, %v303, %v305
        %v320 = vsel %vm318, %v307, %v309
        %v321 = vsel %vm318, %v311, %v313
        %v322 = vsel %vm318, %v315, %v317
        %vm327 = vcmask 785408
        %v329 = vsel %vm327, %v292, 0
        %v332 = vsel %vm327, %v293, 0
        %334 = vmatpush.bf16.msra.mxu0 0
        %335 = vmatpush.bf16.msra.mxu0 0
        %336 = vmatpush.bf16.msra.mxu0 %v277
        %337 = vmatpush.bf16.msra.mxu0 %v276
        %338 = vmatpush.bf16.msra.mxu0 %v264
        %339 = vmatpush.bf16.msra.mxu0 %v263
        %340 = vmatpush.bf16.msra.mxu0 %v235
        %341 = vmatpush.bf16.msra.mxu0 %v234
        %342 = vmatmul.bf16.gmra.mxu0 %v329
        %v343 = vpop.f32.mrf.mxu0
        %v344 = vadd.f32 %v319, %v343
        %v345 = vpop.f32.mrf.mxu0
        %v346 = vadd.f32 %v320, %v345
        %347 = vmatmul.bf16.gmra.mxu0 %v332
        %v348 = vpop.f32.mrf.mxu0
        %v349 = vadd.f32 %v321, %v348
        %v350 = vpop.f32.mrf.mxu0
        %v351 = vadd.f32 %v322, %v350
        %352 = vdwg.mxu0
        %v353 = vld [vmem:[%s2] sm:$0xff]
        %v354 = vld [vmem:[%s2 + $0x8] sm:$0xff]
        %v355 = vld [vmem:[%s2 + $0x10] sm:$0xff]
        %v356 = vld [vmem:[%s2 + $0x18] sm:$0xff]
        %358 = vset.pattern.permute.xlu0 1
        %359 = vperm.xlu0 %358, %v353
        %v360 = vpop.permute.xlu0 %359
        %363 = vset.pattern.permute.xlu0 1
        %364 = vperm.xlu0 %363, %v354
        %v365 = vpop.permute.xlu0 %364
        %368 = vset.pattern.permute.xlu0 1
        %369 = vperm.xlu0 %368, %v355
        %v370 = vpop.permute.xlu0 %369
        %373 = vset.pattern.permute.xlu0 1
        %374 = vperm.xlu0 %373, %v356
        %v375 = vpop.permute.xlu0 %374
        %v377 = vadd.f32 %v344, %v360
        %v378 = vadd.f32 %v346, %v365
        %v379 = vadd.f32 %v349, %v370
        %v380 = vadd.f32 %v351, %v375
        %v381 = vtanh.pop %v377
        %v382 = vtanh.pop %v378
        %v383 = vtanh.pop %v379
        %v384 = vtanh.pop %v380
        %385 = vst [vmem:[%s207] sm:$0xff] %v381
        %386 = vst [vmem:[%s207 + $0x8] sm:$0xff] %v382
        %387 = vst [vmem:[%s207 + $0x10] sm:$0xff] %v383
        %388 = vst [vmem:[%s207 + $0x18] sm:$0xff] %v384
        %s389 = sand.u32 %s112, 1
        %s390 = scalar_lea.sflag [#allocation4], %s389
        %s391 = sand.u32 %s112, 1
        %s392 = smul.addr %s391, 32
        %s393 = scalar_lea.vmem [#allocation5], %s392
        // Predicated region
        $region37: #{tpu_custom_call.1} parent=31 // pred_check
          %p394 = pneg %p122
        $region38: #{tpu_custom_call.1} parent=31 // pred_check_branch
          %396 = sbr.rel (%p394) target = $region40
        $region39: #{tpu_custom_call.1} parent=31 // pred_region
          %398 = vsyncadd %s390, 0
          %s399 = smul.addr %s24, 4
          %s400 = sadd.s32 %s25, %s399
          %s401 = smul.addr %s400, 8
          %s402 = scalar_lea.hbm %s3, %s401
          %s403 = sshll.u32 %s393, 4
          %s404 = int_to_ptr.vmem [resolvable:$true] %s403
          %s405 = sshll.u32 %s402, 4
          %s406 = int_to_ptr.hbm [resolvable:$true] %s405
          %411 = dma.vmem_to_hbm [thread:$0]  %s404, 512, %s406, %s390, 128, 128, 8
        $region40: #{tpu_custom_call.1} parent=31 // pred_fallthru
          _
      $region32: #{tpu_custom_call.1} parent=5 // pred_fallthru
        _
      %p412 = scmp.le.s32.totalorder 2, %s15
      // Predicated region
      $region41: #{tpu_custom_call.1} parent=5 // pred_check
        %p413 = pneg %p412
      $region42: #{tpu_custom_call.1} parent=5 // pred_check_branch
        %415 = sbr.rel (%p413) target = $region44
      $region43: #{tpu_custom_call.1} parent=5 // pred_region
        %s416 = ssub.s32 %s15, 2
        // Predicated region
        $region45: #{tpu_custom_call.1} parent=43 // pred_check
          %p417 = pneg %p128
        $region46: #{tpu_custom_call.1} parent=43 // pred_check_branch
          %419 = sbr.rel (%p417) target = $region48
        $region47: #{tpu_custom_call.1} parent=43 // pred_region
          %s420 = sand.u32 %s113, 1
          %s421 = scalar_lea.sflag [#allocation4], %s420
          %s422 = sand.u32 %s113, 1
          %s423 = smul.addr %s422, 32
          %s424 = scalar_lea.vmem [#allocation5], %s423
          %426 = dma.done %s421, 512
        $region48: #{tpu_custom_call.1} parent=43 // pred_fallthru
          _
      $region44: #{tpu_custom_call.1} parent=5 // pred_fallthru
        _
    $region6: #{tpu_custom_call.1} parent=1 // loop_footer
      %s19 = sadd.s32 1, %s15
    $region7: #{tpu_custom_call.1} parent=1 // loop_footer_branch
      %14 = sbr.rel target = $region3
    $region8: #{tpu_custom_call.1} parent=1 // loop_exit
      _
    %427 = vsyncpa [#allocation3], 1
    %s428 = scalar_lea.sflag [#allocation3], 1
    %429 = vsyncpa %s428, 1
    %430 = vsyncpa [#allocation4], 1
    %s431 = scalar_lea.sflag [#allocation4], 1
    %432 = vsyncpa %s431, 1

</llo_original>
